<compile_context>
chip_gen: v6e
topology: v6e:2x2x1
jax: 0.10.0
libtpu: 0.0.40
codegen_flags: <defaults>
</compile_context>

<pallas_src>
import functools

import jax
import jax.numpy as jnp
from jax.experimental import pallas as pl
from jax.experimental.pallas import tpu as pltpu

N_RBF = 32
N_ACTIONS = 2  # flappy-bird action space: {no-op, flap}


# ---------------------------------------------------------------------------
# Pallas kernel: entire QNetwork forward for one batch block.
# ---------------------------------------------------------------------------
def qnet_kernel(x_ref, rbf_ref, wb1_ref, wb2_ref, wba1_ref, wba2_ref, wbo_ref, o_ref):
    f32 = jnp.float32
    x = x_ref[...].astype(f32)                       # (B, 4)

    # ---- fused RBF slab: [hor | ver_down | ver_top | vel] -> (B, 128) ----
    rbf_c = rbf_ref[...]                             # (6, 128) f32
    proj = rbf_c[0:4]                                # (4, 128) 0/1 replication matrix
    off = rbf_c[4:5]                                 # (1, 128) concatenated offsets
    coeff = rbf_c[5:6]                               # (1, 128) -0.5 / width^2 (host precomputed)

    rep = jnp.dot(x, proj, preferred_element_type=f32)   # one MXU push: x[:, j//32] per lane
    d = rep - off
    slab = jnp.exp(coeff * d * d)                    # (B, 128); exp > 0 so the original ReLUs
                                                     # right after the hor/vel RBFs are no-ops.

    def linear(h, wb_ref, relu):
        wb = wb_ref[...]                             # (K+1, N): weight rows + bias as last row
        w, b = wb[:-1], wb[-1:]
        z = jnp.dot(h.astype(w.dtype), w, preferred_element_type=f32) + b.astype(f32)
        return jnp.maximum(z, 0.0) if relu else z

    # Stage 1: block-diagonal fusion of hor(32->16) | ver1(64->32) | vel(32->16)
    h = linear(slab, wb1_ref, relu=True)             # (B, 64) = [hor16 | ver32 | vel16]
    # Stage 2: block-diag with identity blocks -> folds both concats into the MXU
    h = linear(h, wb2_ref, relu=True)                # (B, 48) = [hor16 | ver2_16 | vel16]
    # att + out
    h = linear(h, wba1_ref, relu=True)               # (B, 24)
    h = linear(h, wba2_ref, relu=True)               # (B, 12)
    o_ref[...] = linear(h, wbo_ref, relu=False).astype(o_ref.dtype)   # (B, n_actions)


# ---------------------------------------------------------------------------
# Raw parameter construction (deterministic, matches PyTorch module shapes).
# ---------------------------------------------------------------------------
def make_rbf_params(n_rbf, cutoff, start):
    offsets = jnp.linspace(start, cutoff, n_rbf, dtype=jnp.float32)
    widths = jnp.abs(offsets[1] - offsets[0]) * jnp.ones_like(offsets)
    return offsets.reshape(1, n_rbf), widths.reshape(1, n_rbf)


def make_linear_params(key, in_dim, out_dim):
    kw, kb = jax.random.split(key)
    bound = 1.0 / jnp.sqrt(in_dim)
    # PyTorch nn.Linear default-ish init; stored pre-transposed as (in, out).
    w = jax.random.uniform(kw, (in_dim, out_dim), jnp.float32, -bound, bound)
    b = jax.random.uniform(kb, (1, out_dim), jnp.float32, -bound, bound)
    return w, b


def make_params(key):
    keys = jax.random.split(key, 7)
    p = {}
    p["hor_off"], p["hor_wid"] = make_rbf_params(N_RBF, 512.0, 0.0)
    p["ver_off"], p["ver_wid"] = make_rbf_params(N_RBF, 288.0, -288.0)
    p["vel_off"], p["vel_wid"] = make_rbf_params(N_RBF, 100.0, -100.0)
    p["hor_w"], p["hor_b"] = make_linear_params(keys[0], 32, 16)
    p["ver_w1"], p["ver_b1"] = make_linear_params(keys[1], 64, 32)
    p["ver_w2"], p["ver_b2"] = make_linear_params(keys[2], 32, 16)
    p["vel_w"], p["vel_b"] = make_linear_params(keys[3], 32, 16)
    p["att_w1"], p["att_b1"] = make_linear_params(keys[4], 48, 24)
    p["att_w2"], p["att_b2"] = make_linear_params(keys[5], 24, 12)
    p["out_w"], p["out_b"] = make_linear_params(keys[6], 12, N_ACTIONS)
    return p


# ---------------------------------------------------------------------------
# Host-side fusion: 20 tensors -> 6 lane-dense slabs.
# ---------------------------------------------------------------------------
def fuse_params(p, mxu_dtype=jnp.float32):
    f32 = jnp.float32

    # RBF constants: replication matrix, concatenated offsets, precomputed coeffs.
    proj = jnp.repeat(jnp.eye(4, dtype=f32), N_RBF, axis=1)                      # (4, 128)
    off = jnp.concatenate([p["hor_off"], p["ver_off"], p["ver_off"], p["vel_off"]], axis=1)
    wid = jnp.concatenate([p["hor_wid"], p["ver_wid"], p["ver_wid"], p["vel_wid"]], axis=1)
    coeff = -0.5 / (wid * wid)                                                   # host precompute
    rbf = jnp.concatenate([proj, off, coeff], axis=0)                            # (6, 128) f32

    def stack_wb(w, b):
        return jnp.concatenate([w.astype(f32), b.astype(f32)], axis=0).astype(mxu_dtype)

    # Stage 1: block-diagonal (128, 64) = diag(hor_w, ver_w1, vel_w)
    w1 = jnp.zeros((4 * N_RBF, 64), f32)
    w1 = w1.at[0:32, 0:16].set(p["hor_w"])
    w1 = w1.at[32:96, 16:48].set(p["ver_w1"])
    w1 = w1.at[96:128, 48:64].set(p["vel_w"])
    b1 = jnp.concatenate([p["hor_b"], p["ver_b1"], p["vel_b"]], axis=1)          # (1, 64)

    # Stage 2: block-diagonal (64, 48) = diag(I16, ver_w2, I16); ReLU(identity
    # passthrough) is exact because hor/vel are already post-ReLU (>= 0).
    eye16 = jnp.eye(16, dtype=f32)
    w2 = jnp.zeros((64, 48), f32)
    w2 = w2.at[0:16, 0:16].set(eye16)
    w2 = w2.at[16:48, 16:32].set(p["ver_w2"])
    w2 = w2.at[48:64, 32:48].set(eye16)
    b2 = jnp.concatenate([jnp.zeros((1, 16), f32), p["ver_b2"], jnp.zeros((1, 16), f32)], axis=1)

    return {
        "rbf": rbf,                                   # (6, 128)  always f32
        "wb1": stack_wb(w1, b1),                      # (129, 64)
        "wb2": stack_wb(w2, b2),                      # (65, 48)
        "wba1": stack_wb(p["att_w1"], p["att_b1"]),   # (49, 24)
        "wba2": stack_wb(p["att_w2"], p["att_b2"]),   # (25, 12)
        "wbo": stack_wb(p["out_w"], p["out_b"]),      # (13, n_actions)
    }


# ---------------------------------------------------------------------------
# Wrapper around pallas_call.
# ---------------------------------------------------------------------------
@functools.partial(jax.jit, static_argnames=("batch_block",))
def qnetwork_forward(x, fused, *, batch_block=1024):
    b = x.shape[0]
    n_actions = fused["wbo"].shape[1]
    param_args = (fused["rbf"], fused["wb1"], fused["wb2"],
                  fused["wba1"], fused["wba2"], fused["wbo"])

    if b <= batch_block:
        # Tiny-batch (DQN acting/training) path: gridless, everything resident in
        # VMEM -- per-grid-step overhead (~0.35us) would dominate at this size.
        vspec = pl.BlockSpec(memory_space=pltpu.MemorySpace.VMEM)
        return pl.pallas_call(
            qnet_kernel,
            out_shape=jax.ShapeDtypeStruct((b, n_actions), jnp.float32),
            in_specs=[vspec] * 7,
            out_specs=vspec,
        )(x, *param_args)

    # Large-batch path: batch grid, x/out pipelined HBM<->VMEM, parallel axis so
    # megacore / v7x dual-TensorCore shards the batch. Tail handled by padding.
    tb = batch_block
    padded = pl.cdiv(b, tb) * tb
    xp = x if padded == b else jnp.pad(x, ((0, padded - b), (0, 0)))
    out = pl.pallas_call(
        qnet_kernel,
        out_shape=jax.ShapeDtypeStruct((padded, n_actions), jnp.float32),
        grid_spec=pltpu.PrefetchScalarGridSpec(
            num_scalar_prefetch=0,
            grid=(padded // tb,),
            in_specs=[pl.BlockSpec((tb, 4), lambda i: (i, 0))]
                     + [pl.BlockSpec(a.shape, lambda i: (0, 0)) for a in param_args],
            out_specs=pl.BlockSpec((tb, n_actions), lambda i: (i, 0)),
        ),
        compiler_params=pltpu.CompilerParams(dimension_semantics=("parallel",)),
    )(xp, *param_args)
    return out[:b]


# ---------------------------------------------------------------------------
# Pure-JAX reference (mirrors the PyTorch forward exactly, unfused params).
# ---------------------------------------------------------------------------
def qnetwork_reference(x, p):
    def rbf(v, off, wid):
        coeff = -0.5 / (wid ** 2)
        diff = v[:, None] - off.reshape(-1)
        return jnp.exp(coeff.reshape(-1) * diff ** 2)

    relu = lambda z: jnp.maximum(z, 0.0)
    lin = lambda h, w, b: h @ w + b

    hor = relu(lin(relu(rbf(x[:, 0], p["hor_off"], p["hor_wid"])), p["hor_w"], p["hor_b"]))
    vd = rbf(x[:, 1], p["ver_off"], p["ver_wid"])
    vt = rbf(x[:, 2], p["ver_off"], p["ver_wid"])
    ver = jnp.concatenate([vd, vt], axis=-1)
    ver = relu(lin(ver, p["ver_w1"], p["ver_b1"]))
    ver = relu(lin(ver, p["ver_w2"], p["ver_b2"]))
    vel = relu(lin(relu(rbf(x[:, 3], p["vel_off"], p["vel_wid"])), p["vel_w"], p["vel_b"]))
    h = jnp.concatenate([hor, ver, vel], axis=-1)
    h = relu(lin(h, p["att_w1"], p["att_b1"]))
    h = relu(lin(h, p["att_w2"], p["att_b2"]))
    return lin(h, p["out_w"], p["out_b"])


if __name__ == "__main__":
    key = jax.random.PRNGKey(0)
    k_params, k_small, k_big = jax.random.split(key, 3)
    params = make_params(k_params)
    fused_f32 = fuse_params(params)

    def make_inputs(k, batch):
        kh, kd, kt, kv = jax.random.split(k, 4)
        hor = jax.random.uniform(kh, (batch,), jnp.float32, 0.0, 512.0)
        vd = jax.random.uniform(kd, (batch,), jnp.float32, -288.0, 288.0)
        vt = jax.random.uniform(kt, (batch,), jnp.float32, -288.0, 288.0)
        vel = jax.random.uniform(kv, (batch,), jnp.float32, -100.0, 100.0)
        return jnp.stack([hor, vd, vt, vel], axis=1)  # (B, 4)

    # 1) tiny-batch gridless path (f32 weights).
    x_small = make_inputs(k_small, 8)
    out_small = jax.block_until_ready(qnetwork_forward(x_small, fused_f32))
    ref_small = qnetwork_reference(x_small, params)
    assert out_small.shape == (8, N_ACTIONS)
    assert jnp.allclose(out_small, ref_small, atol=1e-4, rtol=1e-4), (out_small, ref_small)

    # 2) large-batch gridded path (parallel batch axis, tail padding).
    x_big = make_inputs(k_big, 2500)
    out_big = jax.block_until_ready(qnetwork_forward(x_big, fused_f32, batch_block=1024))
    ref_big = qnetwork_reference(x_big, params)
    assert out_big.shape == (2500, N_ACTIONS)
    assert jnp.allclose(out_big, ref_big, atol=1e-4, rtol=1e-4)

    # 3) bf16 MXU-operand variant (v6e/v7x fast path; RBF math stays f32).
    fused_bf16 = fuse_params(params, mxu_dtype=jnp.bfloat16)
    out_bf16 = jax.block_until_ready(qnetwork_forward(x_small, fused_bf16))
    assert jnp.allclose(out_bf16, ref_small, atol=1e-1, rtol=1e-1)

    print("KERNEL_OK")
</pallas_src>

<mosaic_0001>
module attributes {stable_mosaic.version = 11 : i64} {
  func.func @qnet_kernel(%arg0: memref<8x4xf32, #tpu.memory_space<vmem>>, %arg1: memref<6x128xf32, #tpu.memory_space<vmem>>, %arg2: memref<129x64xf32, #tpu.memory_space<vmem>>, %arg3: memref<65x48xf32, #tpu.memory_space<vmem>>, %arg4: memref<49x24xf32, #tpu.memory_space<vmem>>, %arg5: memref<25x12xf32, #tpu.memory_space<vmem>>, %arg6: memref<13x2xf32, #tpu.memory_space<vmem>>, %arg7: memref<8x2xf32, #tpu.memory_space<vmem>>) attributes {dimension_semantics = [], scalar_prefetch = 0 : i64, scratch_operands = 0 : i64, tpu.core_type = #tpu.core_type<tc>} {
    %c0 = arith.constant 0 : index
    %c0_0 = arith.constant 0 : index
    %0 = vector.load %arg0[%c0, %c0_0] : memref<8x4xf32, #tpu.memory_space<vmem>>, vector<8x4xf32>
    %c0_1 = arith.constant 0 : index
    %c0_2 = arith.constant 0 : index
    %1 = vector.load %arg1[%c0_1, %c0_2] : memref<6x128xf32, #tpu.memory_space<vmem>>, vector<6x128xf32>
    %2 = vector.extract_strided_slice %1 {offsets = [0, 0], sizes = [4, 128], strides = [1, 1]} : vector<6x128xf32> to vector<4x128xf32>
    %3 = vector.extract_strided_slice %1 {offsets = [4, 0], sizes = [1, 128], strides = [1, 1]} : vector<6x128xf32> to vector<1x128xf32>
    %4 = vector.extract_strided_slice %1 {offsets = [5, 0], sizes = [1, 128], strides = [1, 1]} : vector<6x128xf32> to vector<1x128xf32>
    %cst = arith.constant dense<0.000000e+00> : vector<8x128xf32>
    %5 = tpu.matmul %0, %2, %cst {dimension_numbers = #tpu.dot_dimension_numbers<[1], [0], [0], [1], [0, 0, 1, 1], [], []>} : vector<8x4xf32>, vector<4x128xf32>, vector<8x128xf32> -> vector<8x128xf32>
    %6 = vector.broadcast %3 : vector<1x128xf32> to vector<8x128xf32>
    %7 = arith.subf %5, %6 : vector<8x128xf32>
    %8 = vector.broadcast %4 : vector<1x128xf32> to vector<8x128xf32>
    %9 = arith.mulf %8, %7 : vector<8x128xf32>
    %10 = arith.mulf %9, %7 : vector<8x128xf32>
    %11 = math.exp %10 : vector<8x128xf32>
    %c0_3 = arith.constant 0 : index
    %c0_4 = arith.constant 0 : index
    %12 = vector.load %arg2[%c0_3, %c0_4] : memref<129x64xf32, #tpu.memory_space<vmem>>, vector<129x64xf32>
    %13 = vector.extract_strided_slice %12 {offsets = [0, 0], sizes = [128, 64], strides = [1, 1]} : vector<129x64xf32> to vector<128x64xf32>
    %14 = vector.extract_strided_slice %12 {offsets = [128, 0], sizes = [1, 64], strides = [1, 1]} : vector<129x64xf32> to vector<1x64xf32>
    %cst_5 = arith.constant dense<0.000000e+00> : vector<8x64xf32>
    %15 = tpu.matmul %11, %13, %cst_5 {dimension_numbers = #tpu.dot_dimension_numbers<[1], [0], [0], [1], [0, 0, 1, 1], [], []>} : vector<8x128xf32>, vector<128x64xf32>, vector<8x64xf32> -> vector<8x64xf32>
    %16 = vector.broadcast %14 : vector<1x64xf32> to vector<8x64xf32>
    %17 = arith.addf %15, %16 : vector<8x64xf32>
    %cst_6 = arith.constant 0.000000e+00 : f32
    %18 = vector.broadcast %cst_6 : f32 to vector<8x64xf32>
    %19 = arith.maximumf %17, %18 : vector<8x64xf32>
    %c0_7 = arith.constant 0 : index
    %c0_8 = arith.constant 0 : index
    %20 = vector.load %arg3[%c0_7, %c0_8] : memref<65x48xf32, #tpu.memory_space<vmem>>, vector<65x48xf32>
    %21 = vector.extract_strided_slice %20 {offsets = [0, 0], sizes = [64, 48], strides = [1, 1]} : vector<65x48xf32> to vector<64x48xf32>
    %22 = vector.extract_strided_slice %20 {offsets = [64, 0], sizes = [1, 48], strides = [1, 1]} : vector<65x48xf32> to vector<1x48xf32>
    %cst_9 = arith.constant dense<0.000000e+00> : vector<8x48xf32>
    %23 = tpu.matmul %19, %21, %cst_9 {dimension_numbers = #tpu.dot_dimension_numbers<[1], [0], [0], [1], [0, 0, 1, 1], [], []>} : vector<8x64xf32>, vector<64x48xf32>, vector<8x48xf32> -> vector<8x48xf32>
    %24 = vector.broadcast %22 : vector<1x48xf32> to vector<8x48xf32>
    %25 = arith.addf %23, %24 : vector<8x48xf32>
    %cst_10 = arith.constant 0.000000e+00 : f32
    %26 = vector.broadcast %cst_10 : f32 to vector<8x48xf32>
    %27 = arith.maximumf %25, %26 : vector<8x48xf32>
    %c0_11 = arith.constant 0 : index
    %c0_12 = arith.constant 0 : index
    %28 = vector.load %arg4[%c0_11, %c0_12] : memref<49x24xf32, #tpu.memory_space<vmem>>, vector<49x24xf32>
    %29 = vector.extract_strided_slice %28 {offsets = [0, 0], sizes = [48, 24], strides = [1, 1]} : vector<49x24xf32> to vector<48x24xf32>
    %30 = vector.extract_strided_slice %28 {offsets = [48, 0], sizes = [1, 24], strides = [1, 1]} : vector<49x24xf32> to vector<1x24xf32>
    %cst_13 = arith.constant dense<0.000000e+00> : vector<8x24xf32>
    %31 = tpu.matmul %27, %29, %cst_13 {dimension_numbers = #tpu.dot_dimension_numbers<[1], [0], [0], [1], [0, 0, 1, 1], [], []>} : vector<8x48xf32>, vector<48x24xf32>, vector<8x24xf32> -> vector<8x24xf32>
    %32 = vector.broadcast %30 : vector<1x24xf32> to vector<8x24xf32>
    %33 = arith.addf %31, %32 : vector<8x24xf32>
    %cst_14 = arith.constant 0.000000e+00 : f32
    %34 = vector.broadcast %cst_14 : f32 to vector<8x24xf32>
    %35 = arith.maximumf %33, %34 : vector<8x24xf32>
    %c0_15 = arith.constant 0 : index
    %c0_16 = arith.constant 0 : index
    %36 = vector.load %arg5[%c0_15, %c0_16] : memref<25x12xf32, #tpu.memory_space<vmem>>, vector<25x12xf32>
    %37 = vector.extract_strided_slice %36 {offsets = [0, 0], sizes = [24, 12], strides = [1, 1]} : vector<25x12xf32> to vector<24x12xf32>
    %38 = vector.extract_strided_slice %36 {offsets = [24, 0], sizes = [1, 12], strides = [1, 1]} : vector<25x12xf32> to vector<1x12xf32>
    %cst_17 = arith.constant dense<0.000000e+00> : vector<8x12xf32>
    %39 = tpu.matmul %35, %37, %cst_17 {dimension_numbers = #tpu.dot_dimension_numbers<[1], [0], [0], [1], [0, 0, 1, 1], [], []>} : vector<8x24xf32>, vector<24x12xf32>, vector<8x12xf32> -> vector<8x12xf32>
    %40 = vector.broadcast %38 : vector<1x12xf32> to vector<8x12xf32>
    %41 = arith.addf %39, %40 : vector<8x12xf32>
    %cst_18 = arith.constant 0.000000e+00 : f32
    %42 = vector.broadcast %cst_18 : f32 to vector<8x12xf32>
    %43 = arith.maximumf %41, %42 : vector<8x12xf32>
    %c0_19 = arith.constant 0 : index
    %c0_20 = arith.constant 0 : index
    %44 = vector.load %arg6[%c0_19, %c0_20] : memref<13x2xf32, #tpu.memory_space<vmem>>, vector<13x2xf32>
    %45 = vector.extract_strided_slice %44 {offsets = [0, 0], sizes = [12, 2], strides = [1, 1]} : vector<13x2xf32> to vector<12x2xf32>
    %46 = vector.extract_strided_slice %44 {offsets = [12, 0], sizes = [1, 2], strides = [1, 1]} : vector<13x2xf32> to vector<1x2xf32>
    %cst_21 = arith.constant dense<0.000000e+00> : vector<8x2xf32>
    %47 = tpu.matmul %43, %45, %cst_21 {dimension_numbers = #tpu.dot_dimension_numbers<[1], [0], [0], [1], [0, 0, 1, 1], [], []>} : vector<8x12xf32>, vector<12x2xf32>, vector<8x2xf32> -> vector<8x2xf32>
    %48 = vector.broadcast %46 : vector<1x2xf32> to vector<8x2xf32>
    %49 = arith.addf %47, %48 : vector<8x2xf32>
    %c0_22 = arith.constant 0 : index
    %c0_23 = arith.constant 0 : index
    %50 = vector.load %arg7[%c0_22, %c0_23] : memref<8x2xf32, #tpu.memory_space<vmem>>, vector<8x2xf32>
    tpu.vector_store %arg7[%c0_22, %c0_23], %49 {strides = array<i32>} : memref<8x2xf32, #tpu.memory_space<vmem>>, vector<8x2xf32>,
    return
  }
}

</mosaic_0001>

<llo_original>
// kernel: qnetwork_forward.1
$region0: #{qnetwork_forward.1}
  #allocation0 [shape = 'u32[]', space=smem, size = 0x4, offset = 0x4, fixed_abs, tag = 'smem constant byte address 0x4 - core index']
  #allocation1 [shape = 'u32[144,128]{1,0:T(1,128)}', space=vmem, size = 0x12000, scoped, tag = 'internal scratch']
  %s0 = inlined_call_operand.vmem [shape: f32[8,4], index: 0, kind: input, shape index: {}]
  %s1 = inlined_call_operand.vmem [shape: f32[6,128], index: 1, kind: input, shape index: {}]
  %s2 = inlined_call_operand.vmem [shape: f32[129,64], index: 2, kind: input, shape index: {}]
  %s3 = inlined_call_operand.vmem [shape: f32[65,48], index: 3, kind: input, shape index: {}]
  %s4 = inlined_call_operand.vmem [shape: f32[49,24], index: 4, kind: input, shape index: {}]
  %s5 = inlined_call_operand.vmem [shape: f32[25,12], index: 5, kind: input, shape index: {}]
  %s6 = inlined_call_operand.vmem [shape: f32[13,2], index: 6, kind: input, shape index: {}]
  %s7 = inlined_call_operand.vmem [shape: f32[8,2], index: 7, kind: output, shape index: {}]
  %s8 = sld [smem:[#allocation0]]
  $region38: #{qnetwork_forward.1} parent=0
    _
  %s10 = ssub.s32 1, %s8
  %s11 = scalar_select 0, %s10, %s8
  // Predicated region
  $region2: #{qnetwork_forward.1} parent=0 // pred_check
    _
  $region3: #{qnetwork_forward.1} parent=0 // pred_check_branch
    %13 = sbr.rel (0) target = $region5
  $region4: #{qnetwork_forward.1} parent=0 // pred_region
    _
  $region5: #{qnetwork_forward.1} parent=0 // pred_fallthru
    _
  // Predicated region
  $region6: #{qnetwork_forward.1} parent=0 // pred_check
    _
  $region7: #{qnetwork_forward.1} parent=0 // pred_check_branch
    %15 = sbr.rel (0) target = $region9
  $region8: #{qnetwork_forward.1} parent=0 // pred_region
    _
  $region9: #{qnetwork_forward.1} parent=0 // pred_fallthru
    _
  // Predicated region
  $region10: #{qnetwork_forward.1} parent=0 // pred_check
    _
  $region11: #{qnetwork_forward.1} parent=0 // pred_check_branch
    %17 = sbr.rel (0) target = $region13
  $region12: #{qnetwork_forward.1} parent=0 // pred_region
    _
  $region13: #{qnetwork_forward.1} parent=0 // pred_fallthru
    _
  // Predicated region
  $region14: #{qnetwork_forward.1} parent=0 // pred_check
    _
  $region15: #{qnetwork_forward.1} parent=0 // pred_check_branch
    %19 = sbr.rel (0) target = $region17
  $region16: #{qnetwork_forward.1} parent=0 // pred_region
    _
  $region17: #{qnetwork_forward.1} parent=0 // pred_fallthru
    _
  // Predicated region
  $region18: #{qnetwork_forward.1} parent=0 // pred_check
    _
  $region19: #{qnetwork_forward.1} parent=0 // pred_check_branch
    %21 = sbr.rel (0) target = $region21
  $region20: #{qnetwork_forward.1} parent=0 // pred_region
    _
  $region21: #{qnetwork_forward.1} parent=0 // pred_fallthru
    _
  // Predicated region
  $region22: #{qnetwork_forward.1} parent=0 // pred_check
    _
  $region23: #{qnetwork_forward.1} parent=0 // pred_check_branch
    %23 = sbr.rel (0) target = $region25
  $region24: #{qnetwork_forward.1} parent=0 // pred_region
    _
  $region25: #{qnetwork_forward.1} parent=0 // pred_fallthru
    _
  // Predicated region
  $region26: #{qnetwork_forward.1} parent=0 // pred_check
    _
  $region27: #{qnetwork_forward.1} parent=0 // pred_check_branch
    %25 = sbr.rel (0) target = $region29
  $region28: #{qnetwork_forward.1} parent=0 // pred_region
    _
  $region29: #{qnetwork_forward.1} parent=0 // pred_fallthru
    _
  %v26 = vld [vmem:[%s0] sm:$0xff]
  %v27 = vld [vmem:[%s1] sm:$0x3f]
  %vm28 = vcmask 31744
  %v30 = vsel %vm28, %v26, 0
  %vm32 = vcmask 1043456
  %v34 = vsel %vm32, %v27, 0
  %36 = vmatprep.subr.mxu0 0.0
  %37 = vmatpush1.msra.mxu0 0.0
  %38 = vmatprep.subr.mxu0 0.0
  %39 = vmatpush1.msra.mxu0 0.0
  %40 = vmatprep.subr.mxu0 0.0
  %41 = vmatpush1.msra.mxu0 0.0
  %42 = vmatprep.subr.mxu0 0.0
  %43 = vmatpush1.msra.mxu0 0.0
  %44 = vmatprep.subr.mxu0 0.0
  %45 = vmatpush1.msra.mxu0 0.0
  %46 = vmatprep.subr.mxu0 0.0
  %47 = vmatpush1.msra.mxu0 0.0
  %48 = vmatprep.subr.mxu0 0.0
  %49 = vmatpush1.msra.mxu0 0.0
  %50 = vmatprep.subr.mxu0 0.0
  %51 = vmatpush1.msra.mxu0 0.0
  %52 = vmatprep.subr.mxu0 0.0
  %53 = vmatpush1.msra.mxu0 0.0
  %54 = vmatprep.subr.mxu0 0.0
  %55 = vmatpush1.msra.mxu0 0.0
  %56 = vmatprep.subr.mxu0 0.0
  %57 = vmatpush1.msra.mxu0 0.0
  %58 = vmatprep.subr.mxu0 0.0
  %59 = vmatpush1.msra.mxu0 0.0
  %60 = vmatprep.subr.mxu0 0.0
  %61 = vmatpush1.msra.mxu0 0.0
  %62 = vmatprep.subr.mxu0 0.0
  %63 = vmatpush1.msra.mxu0 0.0
  %64 = vmatprep.subr.mxu0 0.0
  %65 = vmatpush1.msra.mxu0 0.0
  %66 = vmatprep.subr.mxu0 0.0
  %67 = vmatpush1.msra.mxu0 %v34
  %68 = vmatprep.subr.mxu0 0.0
  %69 = vmatpush2.msra.mxu0 0.0
  %70 = vmatprep.subr.mxu0 0.0
  %71 = vmatpush2.msra.mxu0 0.0
  %72 = vmatprep.subr.mxu0 0.0
  %73 = vmatpush2.msra.mxu0 0.0
  %74 = vmatprep.subr.mxu0 0.0
  %75 = vmatpush2.msra.mxu0 0.0
  %76 = vmatprep.subr.mxu0 0.0
  %77 = vmatpush2.msra.mxu0 0.0
  %78 = vmatprep.subr.mxu0 0.0
  %79 = vmatpush2.msra.mxu0 0.0
  %80 = vmatprep.subr.mxu0 0.0
  %81 = vmatpush2.msra.mxu0 0.0
  %82 = vmatprep.subr.mxu0 0.0
  %83 = vmatpush2.msra.mxu0 0.0
  %84 = vmatprep.subr.mxu0 0.0
  %85 = vmatpush2.msra.mxu0 0.0
  %86 = vmatprep.subr.mxu0 0.0
  %87 = vmatpush2.msra.mxu0 0.0
  %88 = vmatprep.subr.mxu0 0.0
  %89 = vmatpush2.msra.mxu0 0.0
  %90 = vmatprep.subr.mxu0 0.0
  %91 = vmatpush2.msra.mxu0 0.0
  %92 = vmatprep.subr.mxu0 0.0
  %93 = vmatpush2.msra.mxu0 0.0
  %94 = vmatprep.subr.mxu0 0.0
  %95 = vmatpush2.msra.mxu0 0.0
  %96 = vmatprep.subr.mxu0 0.0
  %97 = vmatpush2.msra.mxu0 0.0
  %98 = vmatprep.subr.mxu0 0.0
  %99 = vmatpush2.msra.mxu0 0.0
  %100 = vmatprep.mubr.f32.mxu0 0.0
  %101 = vmatmul.mubr.f32.gmra.mxu0 %v30
  %v102 = vpop.f32.mrf.mxu0
  %v103 = vadd.f32 0.0, %v102
  %v104 = vpop.f32.mrf.mxu0
  %105 = vdwg.mxu0
  %v106 = vlaneseq
  %v107 = vshrl.u32 %v106, 7
  %v108 = vsub.s32 4, %v107
  %v109 = vrot.slane %v27, %v108
  %v110 = vsub.f32 %v103, %v109
  %v111 = vlaneseq
  %v112 = vshrl.u32 %v111, 7
  %v113 = vsub.s32 5, %v112
  %v114 = vrot.slane %v27, %v113
  %v115 = vmul.f32 %v114, %v110
  %v116 = vmul.f32 %v115, %v110
  %v117 = vmul.f32 %v116, 1.442695
  %v118 = vpow.pop %v117
  %v119 = vld [vmem:[%s2] sm:$0xff]
  %v120 = vld [vmem:[%s2 + $0x8] sm:$0xff]
  %v121 = vld [vmem:[%s2 + $0x10] sm:$0xff]
  %v122 = vld [vmem:[%s2 + $0x18] sm:$0xff]
  %v123 = vld [vmem:[%s2 + $0x20] sm:$0xff]
  %v124 = vld [vmem:[%s2 + $0x28] sm:$0xff]
  %v125 = vld [vmem:[%s2 + $0x30] sm:$0xff]
  %v126 = vld [vmem:[%s2 + $0x38] sm:$0xff]
  %v127 = vld [vmem:[%s2 + $0x40] sm:$0xff]
  %v128 = vld [vmem:[%s2 + $0x48] sm:$0xff]
  %v129 = vld [vmem:[%s2 + $0x50] sm:$0xff]
  %v130 = vld [vmem:[%s2 + $0x58] sm:$0xff]
  %v131 = vld [vmem:[%s2 + $0x60] sm:$0xff]
  %v132 = vld [vmem:[%s2 + $0x68] sm:$0xff]
  %v133 = vld [vmem:[%s2 + $0x70] sm:$0xff]
  %v134 = vld [vmem:[%s2 + $0x78] sm:$0xff]
  %v135 = vld [vmem:[%s2 + $0x80] sm:$0x1]
  %v136 = vlaneseq
  %v137 = vshrl.u32 %v136, 7
  %v138 = vsub.s32 0, %v137
  %v139 = vrot.slane %v135, %v138
  %140 = vmatprep.subr.mxu0 0.0
  %141 = vmatpush1.msra.mxu0 %v134
  %142 = vmatprep.subr.mxu0 0.0
  %143 = vmatpush1.msra.mxu0 %v133
  %144 = vmatprep.subr.mxu0 0.0
  %145 = vmatpush1.msra.mxu0 %v132
  %146 = vmatprep.subr.mxu0 0.0
  %147 = vmatpush1.msra.mxu0 %v131
  %148 = vmatprep.subr.mxu0 0.0
  %149 = vmatpush1.msra.mxu0 %v130
  %150 = vmatprep.subr.mxu0 0.0
  %151 = vmatpush1.msra.mxu0 %v129
  %152 = vmatprep.subr.mxu0 0.0
  %153 = vmatpush1.msra.mxu0 %v128
  %154 = vmatprep.subr.mxu0 0.0
  %155 = vmatpush1.msra.mxu0 %v127
  %156 = vmatprep.subr.mxu0 0.0
  %157 = vmatpush1.msra.mxu0 %v126
  %158 = vmatprep.subr.mxu0 0.0
  %159 = vmatpush1.msra.mxu0 %v125
  %160 = vmatprep.subr.mxu0 0.0
  %161 = vmatpush1.msra.mxu0 %v124
  %162 = vmatprep.subr.mxu0 0.0
  %163 = vmatpush1.msra.mxu0 %v123
  %164 = vmatprep.subr.mxu0 0.0
  %165 = vmatpush1.msra.mxu0 %v122
  %166 = vmatprep.subr.mxu0 0.0
  %167 = vmatpush1.msra.mxu0 %v121
  %168 = vmatprep.subr.mxu0 0.0
  %169 = vmatpush1.msra.mxu0 %v120
  %170 = vmatprep.subr.mxu0 0.0
  %171 = vmatpush1.msra.mxu0 %v119
  %172 = vmatprep.subr.mxu0 0.0
  %173 = vmatpush2.msra.mxu0 0.0
  %174 = vmatprep.subr.mxu0 0.0
  %175 = vmatpush2.msra.mxu0 0.0
  %176 = vmatprep.subr.mxu0 0.0
  %177 = vmatpush2.msra.mxu0 0.0
  %178 = vmatprep.subr.mxu0 0.0
  %179 = vmatpush2.msra.mxu0 0.0
  %180 = vmatprep.subr.mxu0 0.0
  %181 = vmatpush2.msra.mxu0 0.0
  %182 = vmatprep.subr.mxu0 0.0
  %183 = vmatpush2.msra.mxu0 0.0
  %184 = vmatprep.subr.mxu0 0.0
  %185 = vmatpush2.msra.mxu0 0.0
  %186 = vmatprep.subr.mxu0 0.0
  %187 = vmatpush2.msra.mxu0 0.0
  %188 = vmatprep.subr.mxu0 0.0
  %189 = vmatpush2.msra.mxu0 0.0
  %190 = vmatprep.subr.mxu0 0.0
  %191 = vmatpush2.msra.mxu0 0.0
  %192 = vmatprep.subr.mxu0 0.0
  %193 = vmatpush2.msra.mxu0 0.0
  %194 = vmatprep.subr.mxu0 0.0
  %195 = vmatpush2.msra.mxu0 0.0
  %196 = vmatprep.subr.mxu0 0.0
  %197 = vmatpush2.msra.mxu0 0.0
  %198 = vmatprep.subr.mxu0 0.0
  %199 = vmatpush2.msra.mxu0 0.0
  %200 = vmatprep.subr.mxu0 0.0
  %201 = vmatpush2.msra.mxu0 0.0
  %202 = vmatprep.subr.mxu0 0.0
  %203 = vmatpush2.msra.mxu0 0.0
  %204 = vmatprep.mubr.f32.mxu0 0.0
  %205 = vmatmul.mubr.f32.gmra.mxu0 %v118
  %v206 = vpop.f32.mrf.mxu0
  %v207 = vadd.f32 %v139, %v206
  %v208 = vpop.f32.mrf.mxu0
  %209 = vdwg.mxu0
  %v210 = vmax.f32 %v207, 0.0
  %v211 = vld [vmem:[%s3] sm:$0xff]
  %v212 = vld [vmem:[%s3 + $0x8] sm:$0xff]
  %v213 = vld [vmem:[%s3 + $0x10] sm:$0xff]
  %v214 = vld [vmem:[%s3 + $0x18] sm:$0xff]
  %v215 = vld [vmem:[%s3 + $0x20] sm:$0xff]
  %v216 = vld [vmem:[%s3 + $0x28] sm:$0xff]
  %v217 = vld [vmem:[%s3 + $0x30] sm:$0xff]
  %v218 = vld [vmem:[%s3 + $0x38] sm:$0xff]
  %v219 = vld [vmem:[%s3 + $0x40] sm:$0x1]
  %v220 = vlaneseq
  %v221 = vshrl.u32 %v220, 7
  %v222 = vsub.s32 0, %v221
  %v223 = vrot.slane %v219, %v222
  %vm224 = vcmask 523264
  %v226 = vsel %vm224, %v210, 0
  %228 = vmatprep.subr.mxu0 0.0
  %229 = vmatpush1.msra.mxu0 0.0
  %230 = vmatprep.subr.mxu0 0.0
  %231 = vmatpush1.msra.mxu0 0.0
  %232 = vmatprep.subr.mxu0 0.0
  %233 = vmatpush1.msra.mxu0 0.0
  %234 = vmatprep.subr.mxu0 0.0
  %235 = vmatpush1.msra.mxu0 0.0
  %236 = vmatprep.subr.mxu0 0.0
  %237 = vmatpush1.msra.mxu0 0.0
  %238 = vmatprep.subr.mxu0 0.0
  %239 = vmatpush1.msra.mxu0 0.0
  %240 = vmatprep.subr.mxu0 0.0
  %241 = vmatpush1.msra.mxu0 0.0
  %242 = vmatprep.subr.mxu0 0.0
  %243 = vmatpush1.msra.mxu0 0.0
  %244 = vmatprep.subr.mxu0 0.0
  %245 = vmatpush1.msra.mxu0 %v218
  %246 = vmatprep.subr.mxu0 0.0
  %247 = vmatpush1.msra.mxu0 %v217
  %248 = vmatprep.subr.mxu0 0.0
  %249 = vmatpush1.msra.mxu0 %v216
  %250 = vmatprep.subr.mxu0 0.0
  %251 = vmatpush1.msra.mxu0 %v215
  %252 = vmatprep.subr.mxu0 0.0
  %253 = vmatpush1.msra.mxu0 %v214
  %254 = vmatprep.subr.mxu0 0.0
  %255 = vmatpush1.msra.mxu0 %v213
  %256 = vmatprep.subr.mxu0 0.0
  %257 = vmatpush1.msra.mxu0 %v212
  %258 = vmatprep.subr.mxu0 0.0
  %259 = vmatpush1.msra.mxu0 %v211
  %260 = vmatprep.subr.mxu0 0.0
  %261 = vmatpush2.msra.mxu0 0.0
  %262 = vmatprep.subr.mxu0 0.0
  %263 = vmatpush2.msra.mxu0 0.0
  %264 = vmatprep.subr.mxu0 0.0
  %265 = vmatpush2.msra.mxu0 0.0
  %266 = vmatprep.subr.mxu0 0.0
  %267 = vmatpush2.msra.mxu0 0.0
  %268 = vmatprep.subr.mxu0 0.0
  %269 = vmatpush2.msra.mxu0 0.0
  %270 = vmatprep.subr.mxu0 0.0
  %271 = vmatpush2.msra.mxu0 0.0
  %272 = vmatprep.subr.mxu0 0.0
  %273 = vmatpush2.msra.mxu0 0.0
  %274 = vmatprep.subr.mxu0 0.0
  %275 = vmatpush2.msra.mxu0 0.0
  %276 = vmatprep.subr.mxu0 0.0
  %277 = vmatpush2.msra.mxu0 0.0
  %278 = vmatprep.subr.mxu0 0.0
  %279 = vmatpush2.msra.mxu0 0.0
  %280 = vmatprep.subr.mxu0 0.0
  %281 = vmatpush2.msra.mxu0 0.0
  %282 = vmatprep.subr.mxu0 0.0
  %283 = vmatpush2.msra.mxu0 0.0
  %284 = vmatprep.subr.mxu0 0.0
  %285 = vmatpush2.msra.mxu0 0.0
  %286 = vmatprep.subr.mxu0 0.0
  %287 = vmatpush2.msra.mxu0 0.0
  %288 = vmatprep.subr.mxu0 0.0
  %289 = vmatpush2.msra.mxu0 0.0
  %290 = vmatprep.subr.mxu0 0.0
  %291 = vmatpush2.msra.mxu0 0.0
  %292 = vmatprep.mubr.f32.mxu0 0.0
  %293 = vmatmul.mubr.f32.gmra.mxu0 %v226
  %v294 = vpop.f32.mrf.mxu0
  %v295 = vadd.f32 %v223, %v294
  %v296 = vpop.f32.mrf.mxu0
  %297 = vdwg.mxu0
  %v298 = vmax.f32 %v295, 0.0
  %v299 = vld [vmem:[%s4] sm:$0xff]
  %v300 = vld [vmem:[%s4 + $0x8] sm:$0xff]
  %v301 = vld [vmem:[%s4 + $0x10] sm:$0xff]
  %v302 = vld [vmem:[%s4 + $0x18] sm:$0xff]
  %v303 = vld [vmem:[%s4 + $0x20] sm:$0xff]
  %v304 = vld [vmem:[%s4 + $0x28] sm:$0xff]
  %v305 = vld [vmem:[%s4 + $0x30] sm:$0x1]
  %v306 = vlaneseq
  %v307 = vshrl.u32 %v306, 7
  %v308 = vsub.s32 0, %v307
  %v309 = vrot.slane %v305, %v308
  %vm310 = vcmask 392192
  %v312 = vsel %vm310, %v298, 0
  %314 = vmatprep.subr.mxu0 0.0
  %315 = vmatpush1.msra.mxu0 0.0
  %316 = vmatprep.subr.mxu0 0.0
  %317 = vmatpush1.msra.mxu0 0.0
  %318 = vmatprep.subr.mxu0 0.0
  %319 = vmatpush1.msra.mxu0 0.0
  %320 = vmatprep.subr.mxu0 0.0
  %321 = vmatpush1.msra.mxu0 0.0
  %322 = vmatprep.subr.mxu0 0.0
  %323 = vmatpush1.msra.mxu0 0.0
  %324 = vmatprep.subr.mxu0 0.0
  %325 = vmatpush1.msra.mxu0 0.0
  %326 = vmatprep.subr.mxu0 0.0
  %327 = vmatpush1.msra.mxu0 0.0
  %328 = vmatprep.subr.mxu0 0.0
  %329 = vmatpush1.msra.mxu0 0.0
  %330 = vmatprep.subr.mxu0 0.0
  %331 = vmatpush1.msra.mxu0 0.0
  %332 = vmatprep.subr.mxu0 0.0
  %333 = vmatpush1.msra.mxu0 0.0
  %334 = vmatprep.subr.mxu0 0.0
  %335 = vmatpush1.msra.mxu0 %v304
  %336 = vmatprep.subr.mxu0 0.0
  %337 = vmatpush1.msra.mxu0 %v303
  %338 = vmatprep.subr.mxu0 0.0
  %339 = vmatpush1.msra.mxu0 %v302
  %340 = vmatprep.subr.mxu0 0.0
  %341 = vmatpush1.msra.mxu0 %v301
  %342 = vmatprep.subr.mxu0 0.0
  %343 = vmatpush1.msra.mxu0 %v300
  %344 = vmatprep.subr.mxu0 0.0
  %345 = vmatpush1.msra.mxu0 %v299
  %346 = vmatprep.subr.mxu0 0.0
  %347 = vmatpush2.msra.mxu0 0.0
  %348 = vmatprep.subr.mxu0 0.0
  %349 = vmatpush2.msra.mxu0 0.0
  %350 = vmatprep.subr.mxu0 0.0
  %351 = vmatpush2.msra.mxu0 0.0
  %352 = vmatprep.subr.mxu0 0.0
  %353 = vmatpush2.msra.mxu0 0.0
  %354 = vmatprep.subr.mxu0 0.0
  %355 = vmatpush2.msra.mxu0 0.0
  %356 = vmatprep.subr.mxu0 0.0
  %357 = vmatpush2.msra.mxu0 0.0
  %358 = vmatprep.subr.mxu0 0.0
  %359 = vmatpush2.msra.mxu0 0.0
  %360 = vmatprep.subr.mxu0 0.0
  %361 = vmatpush2.msra.mxu0 0.0
  %362 = vmatprep.subr.mxu0 0.0
  %363 = vmatpush2.msra.mxu0 0.0
  %364 = vmatprep.subr.mxu0 0.0
  %365 = vmatpush2.msra.mxu0 0.0
  %366 = vmatprep.subr.mxu0 0.0
  %367 = vmatpush2.msra.mxu0 0.0
  %368 = vmatprep.subr.mxu0 0.0
  %369 = vmatpush2.msra.mxu0 0.0
  %370 = vmatprep.subr.mxu0 0.0
  %371 = vmatpush2.msra.mxu0 0.0
  %372 = vmatprep.subr.mxu0 0.0
  %373 = vmatpush2.msra.mxu0 0.0
  %374 = vmatprep.subr.mxu0 0.0
  %375 = vmatpush2.msra.mxu0 0.0
  %376 = vmatprep.subr.mxu0 0.0
  %377 = vmatpush2.msra.mxu0 0.0
  %378 = vmatprep.mubr.f32.mxu0 0.0
  %379 = vmatmul.mubr.f32.gmra.mxu0 %v312
  %v380 = vpop.f32.mrf.mxu0
  %v381 = vadd.f32 %v309, %v380
  %v382 = vpop.f32.mrf.mxu0
  %383 = vdwg.mxu0
  %v384 = vmax.f32 %v381, 0.0
  %v385 = vld [vmem:[%s5] sm:$0xff]
  %v386 = vld [vmem:[%s5 + $0x8] sm:$0xff]
  %v387 = vld [vmem:[%s5 + $0x10] sm:$0xff]
  %v388 = vld [vmem:[%s5 + $0x18] sm:$0x1]
  %v389 = vlaneseq
  %v390 = vshrl.u32 %v389, 7
  %v391 = vsub.s32 0, %v390
  %v392 = vrot.slane %v388, %v391
  %vm393 = vcmask 195584
  %v395 = vsel %vm393, %v384, 0
  %397 = vmatprep.subr.mxu0 0.0
  %398 = vmatpush1.msra.mxu0 0.0
  %399 = vmatprep.subr.mxu0 0.0
  %400 = vmatpush1.msra.mxu0 0.0
  %401 = vmatprep.subr.mxu0 0.0
  %402 = vmatpush1.msra.mxu0 0.0
  %403 = vmatprep.subr.mxu0 0.0
  %404 = vmatpush1.msra.mxu0 0.0
  %405 = vmatprep.subr.mxu0 0.0
  %406 = vmatpush1.msra.mxu0 0.0
  %407 = vmatprep.subr.mxu0 0.0
  %408 = vmatpush1.msra.mxu0 0.0
  %409 = vmatprep.subr.mxu0 0.0
  %410 = vmatpush1.msra.mxu0 0.0
  %411 = vmatprep.subr.mxu0 0.0
  %412 = vmatpush1.msra.mxu0 0.0
  %413 = vmatprep.subr.mxu0 0.0
  %414 = vmatpush1.msra.mxu0 0.0
  %415 = vmatprep.subr.mxu0 0.0
  %416 = vmatpush1.msra.mxu0 0.0
  %417 = vmatprep.subr.mxu0 0.0
  %418 = vmatpush1.msra.mxu0 0.0
  %419 = vmatprep.subr.mxu0 0.0
  %420 = vmatpush1.msra.mxu0 0.0
  %421 = vmatprep.subr.mxu0 0.0
  %422 = vmatpush1.msra.mxu0 0.0
  %423 = vmatprep.subr.mxu0 0.0
  %424 = vmatpush1.msra.mxu0 %v387
  %425 = vmatprep.subr.mxu0 0.0
  %426 = vmatpush1.msra.mxu0 %v386
  %427 = vmatprep.subr.mxu0 0.0
  %428 = vmatpush1.msra.mxu0 %v385
  %429 = vmatprep.subr.mxu0 0.0
  %430 = vmatpush2.msra.mxu0 0.0
  %431 = vmatprep.subr.mxu0 0.0
  %432 = vmatpush2.msra.mxu0 0.0
  %433 = vmatprep.subr.mxu0 0.0
  %434 = vmatpush2.msra.mxu0 0.0
  %435 = vmatprep.subr.mxu0 0.0
  %436 = vmatpush2.msra.mxu0 0.0
  %437 = vmatprep.subr.mxu0 0.0
  %438 = vmatpush2.msra.mxu0 0.0
  %439 = vmatprep.subr.mxu0 0.0
  %440 = vmatpush2.msra.mxu0 0.0
  %441 = vmatprep.subr.mxu0 0.0
  %442 = vmatpush2.msra.mxu0 0.0
  %443 = vmatprep.subr.mxu0 0.0
  %444 = vmatpush2.msra.mxu0 0.0
  %445 = vmatprep.subr.mxu0 0.0
  %446 = vmatpush2.msra.mxu0 0.0
  %447 = vmatprep.subr.mxu0 0.0
  %448 = vmatpush2.msra.mxu0 0.0
  %449 = vmatprep.subr.mxu0 0.0
  %450 = vmatpush2.msra.mxu0 0.0
  %451 = vmatprep.subr.mxu0 0.0
  %452 = vmatpush2.msra.mxu0 0.0
  %453 = vmatprep.subr.mxu0 0.0
  %454 = vmatpush2.msra.mxu0 0.0
  %455 = vmatprep.subr.mxu0 0.0
  %456 = vmatpush2.msra.mxu0 0.0
  %457 = vmatprep.subr.mxu0 0.0
  %458 = vmatpush2.msra.mxu0 0.0
  %459 = vmatprep.subr.mxu0 0.0
  %460 = vmatpush2.msra.mxu0 0.0
  %461 = vmatprep.mubr.f32.mxu0 0.0
  %462 = vmatmul.mubr.f32.gmra.mxu0 %v395
  %v463 = vpop.f32.mrf.mxu0
  %v464 = vadd.f32 %v392, %v463
  %v465 = vpop.f32.mrf.mxu0
  %466 = vdwg.mxu0
  %v467 = vmax.f32 %v464, 0.0
  %v468 = vld [vmem:[%s6] sm:$0xff]
  %v469 = vld [vmem:[%s6 + $0x8] sm:$0x1f]
  %v470 = vlaneseq
  %v471 = vshrl.u32 %v470, 7
  %v472 = vsub.s32 4, %v471
  %v473 = vrot.slane %v469, %v472
  %vm474 = vcmask 97280
  %v476 = vsel %vm474, %v467, 0
  %v479 = vsel %vm32, %v469, 0
  %481 = vmatprep.subr.mxu0 0.0
  %482 = vmatpush1.msra.mxu0 0.0
  %483 = vmatprep.subr.mxu0 0.0
  %484 = vmatpush1.msra.mxu0 0.0
  %485 = vmatprep.subr.mxu0 0.0
  %486 = vmatpush1.msra.mxu0 0.0
  %487 = vmatprep.subr.mxu0 0.0
  %488 = vmatpush1.msra.mxu0 0.0
  %489 = vmatprep.subr.mxu0 0.0
  %490 = vmatpush1.msra.mxu0 0.0
  %491 = vmatprep.subr.mxu0 0.0
  %492 = vmatpush1.msra.mxu0 0.0
  %493 = vmatprep.subr.mxu0 0.0
  %494 = vmatpush1.msra.mxu0 0.0
  %495 = vmatprep.subr.mxu0 0.0
  %496 = vmatpush1.msra.mxu0 0.0
  %497 = vmatprep.subr.mxu0 0.0
  %498 = vmatpush1.msra.mxu0 0.0
  %499 = vmatprep.subr.mxu0 0.0
  %500 = vmatpush1.msra.mxu0 0.0
  %501 = vmatprep.subr.mxu0 0.0
  %502 = vmatpush1.msra.mxu0 0.0
  %503 = vmatprep.subr.mxu0 0.0
  %504 = vmatpush1.msra.mxu0 0.0
  %505 = vmatprep.subr.mxu0 0.0
  %506 = vmatpush1.msra.mxu0 0.0
  %507 = vmatprep.subr.mxu0 0.0
  %508 = vmatpush1.msra.mxu0 0.0
  %509 = vmatprep.subr.mxu0 0.0
  %510 = vmatpush1.msra.mxu0 %v479
  %511 = vmatprep.subr.mxu0 0.0
  %512 = vmatpush1.msra.mxu0 %v468
  %513 = vmatprep.subr.mxu0 0.0
  %514 = vmatpush2.msra.mxu0 0.0
  %515 = vmatprep.subr.mxu0 0.0
  %516 = vmatpush2.msra.mxu0 0.0
  %517 = vmatprep.subr.mxu0 0.0
  %518 = vmatpush2.msra.mxu0 0.0
  %519 = vmatprep.subr.mxu0 0.0
  %520 = vmatpush2.msra.mxu0 0.0
  %521 = vmatprep.subr.mxu0 0.0
  %522 = vmatpush2.msra.mxu0 0.0
  %523 = vmatprep.subr.mxu0 0.0
  %524 = vmatpush2.msra.mxu0 0.0
  %525 = vmatprep.subr.mxu0 0.0
  %526 = vmatpush2.msra.mxu0 0.0
  %527 = vmatprep.subr.mxu0 0.0
  %528 = vmatpush2.msra.mxu0 0.0
  %529 = vmatprep.subr.mxu0 0.0
  %530 = vmatpush2.msra.mxu0 0.0
  %531 = vmatprep.subr.mxu0 0.0
  %532 = vmatpush2.msra.mxu0 0.0
  %533 = vmatprep.subr.mxu0 0.0
  %534 = vmatpush2.msra.mxu0 0.0
  %535 = vmatprep.subr.mxu0 0.0
  %536 = vmatpush2.msra.mxu0 0.0
  %537 = vmatprep.subr.mxu0 0.0
  %538 = vmatpush2.msra.mxu0 0.0
  %539 = vmatprep.subr.mxu0 0.0
  %540 = vmatpush2.msra.mxu0 0.0
  %541 = vmatprep.subr.mxu0 0.0
  %542 = vmatpush2.msra.mxu0 0.0
  %543 = vmatprep.subr.mxu0 0.0
  %544 = vmatpush2.msra.mxu0 0.0
  %545 = vmatprep.mubr.f32.mxu0 0.0
  %546 = vmatmul.mubr.f32.gmra.mxu0 %v476
  %v547 = vpop.f32.mrf.mxu0
  %v548 = vadd.f32 %v473, %v547
  %v549 = vpop.f32.mrf.mxu0
  %550 = vdwg.mxu0
  %vm551 = vcmask 15360
  %552 = vst.msk [vmem:[%s7] sm:$0xff] %vm551, %v548
  // Predicated region
  $region30: #{qnetwork_forward.1} parent=0 // pred_check
    _
  $region31: #{qnetwork_forward.1} parent=0 // pred_check_branch
    %554 = sbr.rel (0) target = $region33
  $region32: #{qnetwork_forward.1} parent=0 // pred_region
    _
  $region33: #{qnetwork_forward.1} parent=0 // pred_fallthru
    _
  // Predicated region
  $region34: #{qnetwork_forward.1} parent=0 // pred_check
    _
  $region35: #{qnetwork_forward.1} parent=0 // pred_check_branch
    %556 = sbr.rel (0) target = $region37
  $region36: #{qnetwork_forward.1} parent=0 // pred_region
    _
  $region37: #{qnetwork_forward.1} parent=0 // pred_fallthru
    _

</llo_original>
